<compile_context>
chip_gen: v5e
topology: v5e:2x2
jax: 0.10.0
libtpu: 0.0.40
codegen_flags: <defaults>
</compile_context>

<pallas_src>
import functools

import jax
import jax.numpy as jnp
from jax import lax
from jax.experimental import pallas as pl
from jax.experimental.pallas import tpu as pltpu

_NEG_FILL = -1e30  # baked into padded b3 atom columns -> exp() == 0 exactly


def _round_up(x, m):
    return ((x + m - 1) // m) * m


def _c51_kernel(x_ref, w1_ref, b1_ref, w2_ref, b2_ref, w3_ref, b3_ref, out_ref,
                *, atoms_pad, slab_w, chunk_w, approx_recip):
    """One batch tile of the C51 forward pass.

    Shapes (per grid step):
      x_ref  : (TB, D)            -- real feature width, no lane padding
      w1_ref : (D, H_pad),           b1_ref : (1, H_pad)   [bias f32]
      w2_ref : (H_pad, H_pad),       b2_ref : (1, H_pad)
      w3_ref : (H_pad, A_pad*atoms_pad),  b3_ref : (1, A_pad*atoms_pad)
      out_ref: (TB, A_pad*atoms_pad) -- per-action softmax, 128-aligned slabs
    """
    x = x_ref[...]

    # Layer 1: Linear + Tanh (f32 accumulation, f32 activation, bf16 carry).
    h1 = jnp.tanh(
        jnp.dot(x, w1_ref[...], preferred_element_type=jnp.float32)
        + b1_ref[...])
    h1 = h1.astype(w2_ref.dtype)

    # Layer 2: Linear + Tanh.
    h2 = jnp.tanh(
        jnp.dot(h1, w2_ref[...], preferred_element_type=jnp.float32)
        + b2_ref[...])
    h2 = h2.astype(w3_ref.dtype)

    tb = out_ref.shape[0]
    out_w = out_ref.shape[1]
    n_seg = slab_w // atoms_pad          # 2 when two actions share a 128 slab

    if n_seg > 1:
        # Hoisted once per tile: membership of the upper 64-lane segment.
        lane = lax.broadcasted_iota(jnp.int32, (tb, slab_w), 1)
        in_hi_seg = lane >= atoms_pad

    # Layer 3: 256-lane-wide dot chunks (full MXU width on v6e/v7x), then a
    # segmented softmax per 128-lane slab.  Static Python loops (tiny counts).
    for c0 in range(0, out_w, chunk_w):
        cw = min(chunk_w, out_w - c0)
        logits_chunk = (
            jnp.dot(h2, w3_ref[:, c0:c0 + cw],
                    preferred_element_type=jnp.float32)
            + b3_ref[:, c0:c0 + cw])
        for s0 in range(0, cw, slab_w):
            logits = logits_chunk[:, s0:s0 + slab_w]
            # Whole-slab row max: same per-row constant for both segments, so
            # per-segment softmax is unchanged; padded (-1e30) lanes never win.
            m = jnp.max(logits, axis=-1, keepdims=True)
            e = jnp.exp(logits - m)      # padded atom lanes -> exactly 0
            if n_seg == 1:
                denom = jnp.sum(e, axis=-1, keepdims=True)
            else:
                lo = jnp.sum(jnp.where(in_hi_seg, 0.0, e),
                             axis=-1, keepdims=True)
                hi = jnp.sum(jnp.where(in_hi_seg, e, 0.0),
                             axis=-1, keepdims=True)
                denom = jnp.where(in_hi_seg, hi, lo)
            inv = pl.reciprocal(denom, approx=approx_recip)
            # 128-aligned, full-lane stores (never masked partial stores).
            out_ref[:, c0 + s0:c0 + s0 + slab_w] = (e * inv).astype(out_ref.dtype)


def pad_c51_params(params, num_actions, num_atoms, *,
                   compute_dtype=jnp.bfloat16):
    """Prep weights once, outside the hot path.

    Layout: w{1,2,3} are [in_features, out_features] (PyTorch W.T), biases [1, out].
    w3/b3 columns stay grouped per action; with num_atoms <= 64 two actions are
    packed per 128-lane slab (atoms_pad = 64).  Padded atom columns of b3 are
    set to -1e30 so the kernel's exp() masks them to exactly 0 with no selects.
    """
    w1, b1, w2, b2, w3, b3 = params
    D, H = w1.shape
    A = num_actions
    D_pad = _round_up(D, 16)                       # sublane alignment only
    H_pad = _round_up(H, 128)
    atoms_pad = 64 if num_atoms <= 64 else _round_up(num_atoms, 128)
    slab_w = 128 if atoms_pad == 64 else atoms_pad
    A_pad = _round_up(A, slab_w // atoms_pad)

    w1_p = jnp.zeros((D_pad, H_pad), compute_dtype).at[:D, :H].set(
        jnp.asarray(w1).astype(compute_dtype))
    w2_p = jnp.zeros((H_pad, H_pad), compute_dtype).at[:H, :H].set(
        jnp.asarray(w2).astype(compute_dtype))

    def pad_b(b, cols, width):
        b2d = jnp.asarray(b, jnp.float32).reshape(1, width)
        return jnp.zeros((1, cols), jnp.float32).at[:, :width].set(b2d)

    b1_p = pad_b(b1, H_pad, H)
    b2_p = pad_b(b2, H_pad, H)

    # w3: (H, A*N) -> (H_pad, A_pad*atoms_pad), per-action column groups kept.
    w3_g = jnp.asarray(w3).reshape(H, A, num_atoms)
    w3_p = jnp.zeros((H_pad, A_pad, atoms_pad), compute_dtype)
    w3_p = w3_p.at[:H, :A, :num_atoms].set(w3_g.astype(compute_dtype))
    w3_p = w3_p.reshape(H_pad, A_pad * atoms_pad)

    # b3: padded atom lanes -> -1e30 (masked-by-exp); padded action slots (only
    # when A is odd) keep 0 in their real-atom lanes so their segment softmax
    # stays finite (the wrapper slices those action slots away).
    atom_idx = jnp.arange(atoms_pad)
    b3_base = jnp.where(atom_idx < num_atoms, 0.0, _NEG_FILL).astype(jnp.float32)
    b3_p = jnp.broadcast_to(b3_base, (1, A_pad, atoms_pad))
    b3_p = b3_p.at[:, :A, :num_atoms].set(
        jnp.asarray(b3, jnp.float32).reshape(1, A, num_atoms))
    b3_p = b3_p.reshape(1, A_pad * atoms_pad)

    return (w1_p, b1_p, w2_p, b2_p, w3_p, b3_p)


def _pick_batch_tile(B, batch_tile):
    if B <= 8:
        return 8                                   # tiny RL-inference batch
    tb = min(batch_tile, _round_up(B, 8))
    # Ensure >= 2 grid steps when possible so ("parallel",) can shard the batch
    # across v7x's two TensorCores (no-op on single-TC v5e/v6e).
    if _round_up(B, tb) // tb < 2:
        tb = max(8, _round_up(pl.cdiv(B, 2), 8))
    return tb


def c51_forward(x, padded_params, *, num_actions, num_atoms, batch_tile=128,
                keep_padded_atoms=False):
    """C51 forward: softmax probabilities, shape (B, A, num_atoms).

    With keep_padded_atoms=True the (B, A, atoms_pad) slab is returned instead
    (padded atom lanes are exactly 0), which skips the non-contiguous atom
    slice pass; downstream expected-value dots against a zero-padded support
    are unchanged.
    """
    w1, b1, w2, b2, w3, b3 = padded_params
    B, D = x.shape
    D_in, H_pad = w1.shape
    out_w = w3.shape[1]
    atoms_pad = 64 if num_atoms <= 64 else _round_up(num_atoms, 128)
    slab_w = 128 if atoms_pad == 64 else atoms_pad
    A_pad = out_w // atoms_pad
    chunk_w = max(slab_w, min(out_w, 256))
    approx_recip = (w1.dtype != jnp.float32)

    tb = _pick_batch_tile(B, batch_tile)
    b_pad = _round_up(B, tb)

    # Only cheap batch-row (and, if needed, 16-multiple feature) padding; no
    # 128-lane padding of x.
    x_c = x.astype(w1.dtype)
    pad_rows, pad_cols = b_pad - B, D_in - D
    if pad_rows or pad_cols:
        x_c = jnp.pad(x_c, ((0, pad_rows), (0, pad_cols)))

    kernel = functools.partial(
        _c51_kernel, atoms_pad=atoms_pad, slab_w=slab_w, chunk_w=chunk_w,
        approx_recip=approx_recip)

    probs_padded = pl.pallas_call(
        kernel,
        out_shape=jax.ShapeDtypeStruct((b_pad, out_w), jnp.float32),
        grid=(b_pad // tb,),
        in_specs=[
            pl.BlockSpec((tb, D_in), lambda i: (i, 0)),      # x streams per step
            pl.BlockSpec((D_in, H_pad), lambda i: (0, 0)),   # weights stay resident
            pl.BlockSpec((1, H_pad), lambda i: (0, 0)),
            pl.BlockSpec((H_pad, H_pad), lambda i: (0, 0)),
            pl.BlockSpec((1, H_pad), lambda i: (0, 0)),
            pl.BlockSpec((H_pad, out_w), lambda i: (0, 0)),
            pl.BlockSpec((1, out_w), lambda i: (0, 0)),
        ],
        out_specs=pl.BlockSpec((tb, out_w), lambda i: (i, 0)),
        compiler_params=pltpu.CompilerParams(
            dimension_semantics=("parallel",)),
    )(x_c, w1, b1, w2, b2, w3, b3)

    probs = probs_padded[:B].reshape(B, A_pad, atoms_pad)[:, :num_actions, :]
    if keep_padded_atoms:
        return probs
    return probs[:, :, :num_atoms]


def init_params(key, observation_dim, hidden_size, num_actions, num_atoms):
    """Deterministic synthetic parameter init (uniform, PyTorch-ish scale)."""
    ks = jax.random.split(key, 6)

    def lin(kw, kb, fan_in, fan_out):
        bound = 1.0 / jnp.sqrt(fan_in)
        w = jax.random.uniform(kw, (fan_in, fan_out), jnp.float32, -bound, bound)
        b = jax.random.uniform(kb, (1, fan_out), jnp.float32, -bound, bound)
        return w, b

    w1, b1 = lin(ks[0], ks[1], observation_dim, hidden_size)
    w2, b2 = lin(ks[2], ks[3], hidden_size, hidden_size)
    w3, b3 = lin(ks[4], ks[5], hidden_size, num_actions * num_atoms)
    return (w1, b1, w2, b2, w3, b3)


def _reference(x, params, num_actions, num_atoms):
    w1, b1, w2, b2, w3, b3 = params
    h1 = jnp.tanh(x @ w1 + b1)
    h2 = jnp.tanh(h1 @ w2 + b2)
    logits = (h2 @ w3 + b3).reshape(x.shape[0], num_actions, num_atoms)
    return jax.nn.softmax(logits, axis=-1)


# TODO(synk): predict() (expected-value over v_range + argmax) and the Adam
# optimizer state are not part of forward() and are not implemented here.

if __name__ == "__main__":
    observation_dim = 16
    hidden_size = 64
    num_actions = 4
    num_atoms = 51
    batch = 2

    key = jax.random.PRNGKey(0)
    k_params, k_x, k_x2 = jax.random.split(key, 3)

    params = init_params(k_params, observation_dim, hidden_size,
                         num_actions, num_atoms)

    # bf16 is the default perf configuration (native MXU path, halved DMA);
    # an f32-prep variant is used for the tight correctness check.
    padded_bf16 = pad_c51_params(params, num_actions, num_atoms,
                                 compute_dtype=jnp.bfloat16)
    padded_f32 = pad_c51_params(params, num_actions, num_atoms,
                                compute_dtype=jnp.float32)

    # --- tiny RL-inference batch (single grid step) ---
    x = jax.random.normal(k_x, (batch, observation_dim), jnp.float32)
    ref = _reference(x, params, num_actions, num_atoms)

    # f32 path: tight check against the pure-JAX reference.
    probs_f32 = c51_forward(x, padded_f32, num_actions=num_actions,
                            num_atoms=num_atoms)
    probs_f32 = jax.block_until_ready(probs_f32)
    assert probs_f32.shape == (batch, num_actions, num_atoms)
    assert bool(jnp.all(jnp.abs(jnp.sum(probs_f32, axis=-1) - 1.0) < 1e-5))
    assert bool(jnp.all(jnp.abs(probs_f32 - ref) < 1e-5))

    # bf16 path (default perf config): tolerance gated on compute dtype.
    probs_bf16 = c51_forward(x, padded_bf16, num_actions=num_actions,
                             num_atoms=num_atoms)
    probs_bf16 = jax.block_until_ready(probs_bf16)
    assert probs_bf16.shape == (batch, num_actions, num_atoms)
    assert bool(jnp.all(jnp.abs(jnp.sum(probs_bf16, axis=-1) - 1.0) < 1e-2))
    assert bool(jnp.all(jnp.abs(probs_bf16 - ref) < 2e-2))

    # --- larger batch exercises the tiled / pipelined / multi-step grid path ---
    batch2 = 260  # pads to 384 rows -> 3 parallel steps of 128
    x2 = jax.random.normal(k_x2, (batch2, observation_dim), jnp.float32)
    ref2 = _reference(x2, params, num_actions, num_atoms)
    probs2 = c51_forward(x2, padded_bf16, num_actions=num_actions,
                         num_atoms=num_atoms)
    probs2 = jax.block_until_ready(probs2)
    assert probs2.shape == (batch2, num_actions, num_atoms)
    assert bool(jnp.all(jnp.abs(jnp.sum(probs2, axis=-1) - 1.0) < 1e-2))
    assert bool(jnp.all(jnp.abs(probs2 - ref2) < 2e-2))

    # Padded-atom fast path: padded lanes are exactly 0.
    probs_pad = c51_forward(x2, padded_bf16, num_actions=num_actions,
                            num_atoms=num_atoms, keep_padded_atoms=True)
    probs_pad = jax.block_until_ready(probs_pad)
    assert probs_pad.shape[-1] == 64
    assert bool(jnp.all(probs_pad[:, :, num_atoms:] == 0.0))

    print("KERNEL_OK")
</pallas_src>

<mosaic_0001>
module attributes {stable_mosaic.version = 11 : i64} {
  func.func @_c51_kernel(%arg0: i32, %arg1: memref<8x16xf32, #tpu.memory_space<vmem>>, %arg2: memref<16x128xf32, #tpu.memory_space<vmem>>, %arg3: memref<1x128xf32, #tpu.memory_space<vmem>>, %arg4: memref<128x128xf32, #tpu.memory_space<vmem>>, %arg5: memref<1x128xf32, #tpu.memory_space<vmem>>, %arg6: memref<128x256xf32, #tpu.memory_space<vmem>>, %arg7: memref<1x256xf32, #tpu.memory_space<vmem>>, %arg8: memref<8x256xf32, #tpu.memory_space<vmem>>) attributes {dimension_semantics = [#tpu.dimension_semantics<parallel>], iteration_bounds = array<i64: 1>, scalar_prefetch = 0 : i64, scratch_operands = 0 : i64, tpu.core_type = #tpu.core_type<tc>, window_params = [{transform_indices = @transform_0, window_bounds = array<i64: 8, 16>}, {pipeline_mode = #tpu.pipeline_mode<synchronous>, transform_indices = @transform_1, window_bounds = array<i64: 16, 128>}, {pipeline_mode = #tpu.pipeline_mode<synchronous>, transform_indices = @transform_2, window_bounds = array<i64: 1, 128>}, {pipeline_mode = #tpu.pipeline_mode<synchronous>, transform_indices = @transform_3, window_bounds = array<i64: 128, 128>}, {pipeline_mode = #tpu.pipeline_mode<synchronous>, transform_indices = @transform_4, window_bounds = array<i64: 1, 128>}, {pipeline_mode = #tpu.pipeline_mode<synchronous>, transform_indices = @transform_5, window_bounds = array<i64: 128, 256>}, {pipeline_mode = #tpu.pipeline_mode<synchronous>, transform_indices = @transform_6, window_bounds = array<i64: 1, 256>}, {transform_indices = @transform_7, window_bounds = array<i64: 8, 256>}]} {
    %c0 = arith.constant 0 : index
    %c0_0 = arith.constant 0 : index
    %0 = vector.load %arg1[%c0, %c0_0] : memref<8x16xf32, #tpu.memory_space<vmem>>, vector<8x16xf32>
    %c0_1 = arith.constant 0 : index
    %c0_2 = arith.constant 0 : index
    %1 = vector.load %arg2[%c0_1, %c0_2] : memref<16x128xf32, #tpu.memory_space<vmem>>, vector<16x128xf32>
    %cst = arith.constant dense<0.000000e+00> : vector<8x128xf32>
    %2 = tpu.matmul %0, %1, %cst {dimension_numbers = #tpu.dot_dimension_numbers<[1], [0], [0], [1], [0, 0, 1, 1], [], []>} : vector<8x16xf32>, vector<16x128xf32>, vector<8x128xf32> -> vector<8x128xf32>
    %c0_3 = arith.constant 0 : index
    %c0_4 = arith.constant 0 : index
    %3 = vector.load %arg3[%c0_3, %c0_4] : memref<1x128xf32, #tpu.memory_space<vmem>>, vector<1x128xf32>
    %4 = vector.broadcast %3 : vector<1x128xf32> to vector<8x128xf32>
    %5 = arith.addf %2, %4 : vector<8x128xf32>
    %6 = math.tanh %5 : vector<8x128xf32>
    %c0_5 = arith.constant 0 : index
    %c0_6 = arith.constant 0 : index
    %7 = vector.load %arg4[%c0_5, %c0_6] : memref<128x128xf32, #tpu.memory_space<vmem>>, vector<128x128xf32>
    %cst_7 = arith.constant dense<0.000000e+00> : vector<8x128xf32>
    %8 = tpu.matmul %6, %7, %cst_7 {dimension_numbers = #tpu.dot_dimension_numbers<[1], [0], [0], [1], [0, 0, 1, 1], [], []>} : vector<8x128xf32>, vector<128x128xf32>, vector<8x128xf32> -> vector<8x128xf32>
    %c0_8 = arith.constant 0 : index
    %c0_9 = arith.constant 0 : index
    %9 = vector.load %arg5[%c0_8, %c0_9] : memref<1x128xf32, #tpu.memory_space<vmem>>, vector<1x128xf32>
    %10 = vector.broadcast %9 : vector<1x128xf32> to vector<8x128xf32>
    %11 = arith.addf %8, %10 : vector<8x128xf32>
    %12 = math.tanh %11 : vector<8x128xf32>
    %13 = tpu.iota {dimensions = array<i32: 1>} : vector<8x128xi32>
    %c64_i32 = arith.constant 64 : i32
    %14 = vector.broadcast %c64_i32 : i32 to vector<8x128xi32>
    %15 = arith.cmpi sge, %13, %14 : vector<8x128xi32>
    %c0_10 = arith.constant 0 : index
    %c0_11 = arith.constant 0 : index
    %16 = vector.load %arg6[%c0_10, %c0_11] : memref<128x256xf32, #tpu.memory_space<vmem>>, vector<128x256xf32>
    %cst_12 = arith.constant dense<0.000000e+00> : vector<8x256xf32>
    %17 = tpu.matmul %12, %16, %cst_12 {dimension_numbers = #tpu.dot_dimension_numbers<[1], [0], [0], [1], [0, 0, 1, 1], [], []>} : vector<8x128xf32>, vector<128x256xf32>, vector<8x256xf32> -> vector<8x256xf32>
    %c0_13 = arith.constant 0 : index
    %c0_14 = arith.constant 0 : index
    %18 = vector.load %arg7[%c0_13, %c0_14] : memref<1x256xf32, #tpu.memory_space<vmem>>, vector<1x256xf32>
    %19 = vector.broadcast %18 : vector<1x256xf32> to vector<8x256xf32>
    %20 = arith.addf %17, %19 : vector<8x256xf32>
    %21 = vector.extract_strided_slice %20 {offsets = [0, 0], sizes = [8, 128], strides = [1, 1]} : vector<8x256xf32> to vector<8x128xf32>
    %cst_15 = arith.constant dense<0xFF800000> : vector<8xf32>
    %22 = vector.multi_reduction <maximumf>, %21, %cst_15 [1] : vector<8x128xf32> to vector<8xf32>
    %23 = vector.shape_cast %22 : vector<8xf32> to vector<8x1xf32>
    %24 = vector.broadcast %23 : vector<8x1xf32> to vector<8x128xf32>
    %25 = arith.subf %21, %24 : vector<8x128xf32>
    %26 = math.exp %25 : vector<8x128xf32>
    %cst_16 = arith.constant 0.000000e+00 : f32
    %27 = vector.broadcast %cst_16 : f32 to vector<8x128xf32>
    %28 = arith.select %15, %27, %26 : vector<8x128xi1>, vector<8x128xf32>
    %cst_17 = arith.constant dense<0.000000e+00> : vector<8xf32>
    %29 = vector.multi_reduction <add>, %28, %cst_17 [1] : vector<8x128xf32> to vector<8xf32>
    %30 = vector.shape_cast %29 : vector<8xf32> to vector<8x1xf32>
    %cst_18 = arith.constant 0.000000e+00 : f32
    %31 = vector.broadcast %cst_18 : f32 to vector<8x128xf32>
    %32 = arith.select %15, %26, %31 : vector<8x128xi1>, vector<8x128xf32>
    %cst_19 = arith.constant dense<0.000000e+00> : vector<8xf32>
    %33 = vector.multi_reduction <add>, %32, %cst_19 [1] : vector<8x128xf32> to vector<8xf32>
    %34 = vector.shape_cast %33 : vector<8xf32> to vector<8x1xf32>
    %35 = vector.shape_cast %34 : vector<8x1xf32> to vector<8x1xf32>
    %36 = vector.broadcast %35 : vector<8x1xf32> to vector<8x128xf32>
    %37 = vector.shape_cast %30 : vector<8x1xf32> to vector<8x1xf32>
    %38 = vector.broadcast %37 : vector<8x1xf32> to vector<8x128xf32>
    %39 = arith.select %15, %36, %38 : vector<8x128xi1>, vector<8x128xf32>
    %40 = tpu.reciprocal %39 : vector<8x128xf32> -> vector<8x128xf32>
    %41 = arith.mulf %26, %40 : vector<8x128xf32>
    %c0_20 = arith.constant 0 : index
    %c0_21 = arith.constant 0 : index
    %42 = vector.load %arg8[%c0_20, %c0_21] : memref<8x256xf32, #tpu.memory_space<vmem>>, vector<8x128xf32>
    tpu.vector_store %arg8[%c0_20, %c0_21], %41 {strides = array<i32>} : memref<8x256xf32, #tpu.memory_space<vmem>>, vector<8x128xf32>,
    %43 = vector.extract_strided_slice %20 {offsets = [0, 128], sizes = [8, 128], strides = [1, 1]} : vector<8x256xf32> to vector<8x128xf32>
    %cst_22 = arith.constant dense<0xFF800000> : vector<8xf32>
    %44 = vector.multi_reduction <maximumf>, %43, %cst_22 [1] : vector<8x128xf32> to vector<8xf32>
    %45 = vector.shape_cast %44 : vector<8xf32> to vector<8x1xf32>
    %46 = vector.broadcast %45 : vector<8x1xf32> to vector<8x128xf32>
    %47 = arith.subf %43, %46 : vector<8x128xf32>
    %48 = math.exp %47 : vector<8x128xf32>
    %cst_23 = arith.constant 0.000000e+00 : f32
    %49 = vector.broadcast %cst_23 : f32 to vector<8x128xf32>
    %50 = arith.select %15, %49, %48 : vector<8x128xi1>, vector<8x128xf32>
    %cst_24 = arith.constant dense<0.000000e+00> : vector<8xf32>
    %51 = vector.multi_reduction <add>, %50, %cst_24 [1] : vector<8x128xf32> to vector<8xf32>
    %52 = vector.shape_cast %51 : vector<8xf32> to vector<8x1xf32>
    %cst_25 = arith.constant 0.000000e+00 : f32
    %53 = vector.broadcast %cst_25 : f32 to vector<8x128xf32>
    %54 = arith.select %15, %48, %53 : vector<8x128xi1>, vector<8x128xf32>
    %cst_26 = arith.constant dense<0.000000e+00> : vector<8xf32>
    %55 = vector.multi_reduction <add>, %54, %cst_26 [1] : vector<8x128xf32> to vector<8xf32>
    %56 = vector.shape_cast %55 : vector<8xf32> to vector<8x1xf32>
    %57 = vector.shape_cast %56 : vector<8x1xf32> to vector<8x1xf32>
    %58 = vector.broadcast %57 : vector<8x1xf32> to vector<8x128xf32>
    %59 = vector.shape_cast %52 : vector<8x1xf32> to vector<8x1xf32>
    %60 = vector.broadcast %59 : vector<8x1xf32> to vector<8x128xf32>
    %61 = arith.select %15, %58, %60 : vector<8x128xi1>, vector<8x128xf32>
    %62 = tpu.reciprocal %61 : vector<8x128xf32> -> vector<8x128xf32>
    %63 = arith.mulf %48, %62 : vector<8x128xf32>
    %c0_27 = arith.constant 0 : index
    %c128 = arith.constant 128 : index
    %64 = vector.load %arg8[%c0_27, %c128] : memref<8x256xf32, #tpu.memory_space<vmem>>, vector<8x128xf32>
    tpu.vector_store %arg8[%c0_27, %c128], %63 {strides = array<i32>} : memref<8x256xf32, #tpu.memory_space<vmem>>, vector<8x128xf32>,
    return
  }
  func.func @transform_0(%arg0: i32) -> (i32, i32) {
    %c0_i32 = arith.constant 0 : i32
    %c0_i32_0 = arith.constant 0 : i32
    return %arg0, %c0_i32 : i32, i32
  }
  func.func @transform_1(%arg0: i32) -> (i32, i32) {
    %c0_i32 = arith.constant 0 : i32
    %c0_i32_0 = arith.constant 0 : i32
    %c0_i32_1 = arith.constant 0 : i32
    return %c0_i32, %c0_i32_0 : i32, i32
  }
  func.func @transform_2(%arg0: i32) -> (i32, i32) {
    %c0_i32 = arith.constant 0 : i32
    %c0_i32_0 = arith.constant 0 : i32
    %c0_i32_1 = arith.constant 0 : i32
    return %c0_i32, %c0_i32_0 : i32, i32
  }
  func.func @transform_3(%arg0: i32) -> (i32, i32) {
    %c0_i32 = arith.constant 0 : i32
    %c0_i32_0 = arith.constant 0 : i32
    %c0_i32_1 = arith.constant 0 : i32
    return %c0_i32, %c0_i32_0 : i32, i32
  }
  func.func @transform_4(%arg0: i32) -> (i32, i32) {
    %c0_i32 = arith.constant 0 : i32
    %c0_i32_0 = arith.constant 0 : i32
    %c0_i32_1 = arith.constant 0 : i32
    return %c0_i32, %c0_i32_0 : i32, i32
  }
  func.func @transform_5(%arg0: i32) -> (i32, i32) {
    %c0_i32 = arith.constant 0 : i32
    %c0_i32_0 = arith.constant 0 : i32
    %c0_i32_1 = arith.constant 0 : i32
    return %c0_i32, %c0_i32_0 : i32, i32
  }
  func.func @transform_6(%arg0: i32) -> (i32, i32) {
    %c0_i32 = arith.constant 0 : i32
    %c0_i32_0 = arith.constant 0 : i32
    %c0_i32_1 = arith.constant 0 : i32
    return %c0_i32, %c0_i32_0 : i32, i32
  }
  func.func @transform_7(%arg0: i32) -> (i32, i32) {
    %c0_i32 = arith.constant 0 : i32
    %c0_i32_0 = arith.constant 0 : i32
    return %arg0, %c0_i32 : i32, i32
  }
}

</mosaic_0001>

<llo_original>
// kernel: tpu_custom_call.1
$region0: #{tpu_custom_call.1}
  #allocation0 [shape = 'u32[]', space=smem, size = 0x4, offset = 0x4, fixed_abs, tag = 'smem constant byte address 0x4 - core index']
  #allocation1 [shape = 'u32[72,128]{1,0:T(1,128)}', space=vmem, size = 0x9000, scoped, tag = 'internal scratch']
  %s0 = inlined_call_operand.hbm [shape: f32[8,16], index: 0, kind: input, shape index: {}]
  %s1 = inlined_call_operand.hbm [shape: f32[16,128], index: 1, kind: input, shape index: {}]
  %s2 = inlined_call_operand.vmem [shape: f32[1,128], index: 2, kind: input, shape index: {}]
  %s3 = inlined_call_operand.hbm [shape: f32[128,128], index: 3, kind: input, shape index: {}]
  %s4 = inlined_call_operand.hbm [shape: f32[1,128], index: 4, kind: input, shape index: {}]
  %s5 = inlined_call_operand.hbm [shape: f32[128,256], index: 5, kind: input, shape index: {}]
  %s6 = inlined_call_operand.vmem [shape: f32[1,256], index: 6, kind: input, shape index: {}]
  %s7 = inlined_call_operand.hbm [shape: f32[8,256], index: 7, kind: output, shape index: {}]
  %s8 = sld [smem:[#allocation0]]
  $region58: #{tpu_custom_call.1} parent=0
    _
  %s10 = ssub.s32 1, %s8
  %s11 = scalar_select 0, %s10, %s8
  $region1: #{tpu_custom_call.1} parent=0
    #allocation2 [shape = 'u8[4096]{0}', space=vmem, size = 0x1000, scoped, tag = 'input window, operand 0, single buffered']
    #allocation3 [shape = 's32[1]{0}', space=sflag, size = 0x4, scoped, tag = 'scoped memory for tpu_custom_call.1']
    #allocation4 [shape = 's32[1]{0}', space=sflag, size = 0x4, scoped, tag = 'scoped memory for tpu_custom_call.1']
    #allocation5 [shape = 'u8[8192]{0}', space=vmem, size = 0x2000, scoped, tag = 'input window, operand 1, single buffered']
    #allocation6 [shape = 's32[1]{0}', space=sflag, size = 0x4, scoped, tag = 'scoped memory for tpu_custom_call.1']
    #allocation7 [shape = 'u8[65536]{0}', space=vmem, size = 0x10000, scoped, tag = 'input window, operand 3, single buffered']
    #allocation8 [shape = 'u8[512]{0}', space=vmem, size = 0x400, scoped, tag = 'input window, operand 4, single buffered']
    #allocation9 [shape = 's32[1]{0}', space=sflag, size = 0x4, scoped, tag = 'scoped memory for tpu_custom_call.1']
    #allocation10 [shape = 'u8[131072]{0}', space=vmem, size = 0x20000, scoped, tag = 'input window, operand 5, single buffered']
    #allocation11 [shape = 'u8[8192]{0}', space=vmem, size = 0x2000, scoped, tag = 'output window, operand 0, single buffered']
    %12 = vsyncpa [#allocation3], 0
    %13 = vsyncpa [#allocation6], 0
    %14 = vsyncpa [#allocation9], 0
    %15 = vsyncpa [#allocation4], 0
    // Predicated region
    $region2: #{tpu_custom_call.1} parent=1 // pred_check
      _
    $region3: #{tpu_custom_call.1} parent=1 // pred_check_branch
      %17 = sbr.rel (0) target = $region5
    $region4: #{tpu_custom_call.1} parent=1 // pred_region
      %19 = vsyncadd [#allocation3], 0
      %s21 = sshll.u32 %s0, 4
      %s22 = int_to_ptr.hbm [resolvable:$true] %s21
      %s23 = sshll.u32 [#allocation2], 4
      %s24 = int_to_ptr.vmem [resolvable:$true] %s23
      %26 = dma.hbm_to_vmem [thread:$0]  %s22, 128, %s24, [#allocation3]
    $region5: #{tpu_custom_call.1} parent=1 // pred_fallthru
      _
    // Predicated region
    $region6: #{tpu_custom_call.1} parent=1 // pred_check
      _
    $region7: #{tpu_custom_call.1} parent=1 // pred_check_branch
      %28 = sbr.rel (0) target = $region9
    $region8: #{tpu_custom_call.1} parent=1 // pred_region
      %30 = vsyncadd [#allocation6], 0
      %s31 = sshll.u32 %s1, 4
      %s32 = int_to_ptr.hbm [resolvable:$true] %s31
      %s33 = sshll.u32 [#allocation5], 4
      %s34 = int_to_ptr.vmem [resolvable:$true] %s33
      %39 = dma.hbm_to_vmem [thread:$0]  %s32, 256, %s34, [#allocation6], 128, 128, 8
    $region9: #{tpu_custom_call.1} parent=1 // pred_fallthru
      _
    // Predicated region
    $region10: #{tpu_custom_call.1} parent=1 // pred_check
      _
    $region11: #{tpu_custom_call.1} parent=1 // pred_check_branch
      %41 = sbr.rel (0) target = $region13
    $region12: #{tpu_custom_call.1} parent=1 // pred_region
      _
    $region13: #{tpu_custom_call.1} parent=1 // pred_fallthru
      _
    // Predicated region
    $region14: #{tpu_custom_call.1} parent=1 // pred_check
      _
    $region15: #{tpu_custom_call.1} parent=1 // pred_check_branch
      %43 = sbr.rel (0) target = $region17
    $region16: #{tpu_custom_call.1} parent=1 // pred_region
      %45 = vsyncadd [#allocation6], 0
      %s46 = sshll.u32 %s3, 4
      %s47 = int_to_ptr.hbm [resolvable:$true] %s46
      %s48 = sshll.u32 [#allocation7], 4
      %s49 = int_to_ptr.vmem [resolvable:$true] %s48
      %54 = dma.hbm_to_vmem [thread:$0]  %s47, 2048, %s49, [#allocation6], 128, 128, 8
    $region17: #{tpu_custom_call.1} parent=1 // pred_fallthru
      _
    // Predicated region
    $region18: #{tpu_custom_call.1} parent=1 // pred_check
      _
    $region19: #{tpu_custom_call.1} parent=1 // pred_check_branch
      %56 = sbr.rel (0) target = $region21
    $region20: #{tpu_custom_call.1} parent=1 // pred_region
      %58 = vsyncadd [#allocation9], 0
      %s60 = sshll.u32 %s4, 4
      %s61 = int_to_ptr.hbm [resolvable:$true] %s60
      %s62 = sshll.u32 [#allocation8], 4
      %s63 = int_to_ptr.vmem [resolvable:$true] %s62
      %65 = dma.hbm_to_vmem [thread:$0]  %s61, 16, %s63, [#allocation9]
    $region21: #{tpu_custom_call.1} parent=1 // pred_fallthru
      _
    // Predicated region
    $region22: #{tpu_custom_call.1} parent=1 // pred_check
      _
    $region23: #{tpu_custom_call.1} parent=1 // pred_check_branch
      %67 = sbr.rel (0) target = $region25
    $region24: #{tpu_custom_call.1} parent=1 // pred_region
      %69 = vsyncadd [#allocation9], 0
      %s70 = sshll.u32 %s5, 4
      %s71 = int_to_ptr.hbm [resolvable:$true] %s70
      %s72 = sshll.u32 [#allocation10], 4
      %s73 = int_to_ptr.vmem [resolvable:$true] %s72
      %78 = dma.hbm_to_vmem [thread:$0]  %s71, 4096, %s73, [#allocation9], 256, 256, 16
    $region25: #{tpu_custom_call.1} parent=1 // pred_fallthru
      _
    // Predicated region
    $region26: #{tpu_custom_call.1} parent=1 // pred_check
      _
    $region27: #{tpu_custom_call.1} parent=1 // pred_check_branch
      %80 = sbr.rel (0) target = $region29
    $region28: #{tpu_custom_call.1} parent=1 // pred_region
      _
    $region29: #{tpu_custom_call.1} parent=1 // pred_fallthru
      _
    // Predicated region
    $region30: #{tpu_custom_call.1} parent=1 // pred_check
      _
    $region31: #{tpu_custom_call.1} parent=1 // pred_check_branch
      %82 = sbr.rel (0) target = $region33
    $region32: #{tpu_custom_call.1} parent=1 // pred_region
      %84 = dma.done [#allocation3], 128
    $region33: #{tpu_custom_call.1} parent=1 // pred_fallthru
      _
    // Predicated region
    $region34: #{tpu_custom_call.1} parent=1 // pred_check
      _
    $region35: #{tpu_custom_call.1} parent=1 // pred_check_branch
      %86 = sbr.rel (0) target = $region37
    $region36: #{tpu_custom_call.1} parent=1 // pred_region
      %88 = dma.done [#allocation6], 256
    $region37: #{tpu_custom_call.1} parent=1 // pred_fallthru
      _
    // Predicated region
    $region38: #{tpu_custom_call.1} parent=1 // pred_check
      _
    $region39: #{tpu_custom_call.1} parent=1 // pred_check_branch
      %90 = sbr.rel (0) target = $region41
    $region40: #{tpu_custom_call.1} parent=1 // pred_region
      %92 = dma.done [#allocation6], 2048
    $region41: #{tpu_custom_call.1} parent=1 // pred_fallthru
      _
    // Predicated region
    $region42: #{tpu_custom_call.1} parent=1 // pred_check
      _
    $region43: #{tpu_custom_call.1} parent=1 // pred_check_branch
      %94 = sbr.rel (0) target = $region45
    $region44: #{tpu_custom_call.1} parent=1 // pred_region
      %96 = dma.done [#allocation9], 16
    $region45: #{tpu_custom_call.1} parent=1 // pred_fallthru
      _
    // Predicated region
    $region46: #{tpu_custom_call.1} parent=1 // pred_check
      _
    $region47: #{tpu_custom_call.1} parent=1 // pred_check_branch
      %98 = sbr.rel (0) target = $region49
    $region48: #{tpu_custom_call.1} parent=1 // pred_region
      %100 = dma.done [#allocation9], 4096
    $region49: #{tpu_custom_call.1} parent=1 // pred_fallthru
      _
    %v101 = vld [vmem:[#allocation2] sm:$0xff]
    %v102 = vld [vmem:[#allocation5] sm:$0xff]
    %v103 = vld [vmem:[#allocation5 + $0x8] sm:$0xff]
    %v104 = vld [vmem:[%s2] sm:$0x1]
    %v106 = vperm.slane %v104, 0
    %vm108 = vcmask 130048
    %v110 = vsel %vm108, %v101, 0
    %112 = vmatpush.msra.mxu0 0.0
    %113 = vmatpush.msra.mxu0 0.0
    %114 = vmatpush.msra.mxu0 0.0
    %115 = vmatpush.msra.mxu0 0.0
    %116 = vmatpush.msra.mxu0 0.0
    %117 = vmatpush.msra.mxu0 0.0
    %118 = vmatpush.msra.mxu0 0.0
    %119 = vmatpush.msra.mxu0 0.0
    %120 = vmatpush.msra.mxu0 0.0
    %121 = vmatpush.msra.mxu0 0.0
    %122 = vmatpush.msra.mxu0 0.0
    %123 = vmatpush.msra.mxu0 0.0
    %124 = vmatpush.msra.mxu0 0.0
    %125 = vmatpush.msra.mxu0 0.0
    %126 = vmatpush.msra.mxu0 %v103
    %127 = vmatpush.msra.mxu0 %v102
    %128 = vmatmul.f32.gmra.mxu0 %v110
    %v129 = vpop.f32.mrf.mxu0
    %v130 = vadd.f32 %v106, %v129
    %131 = vdwg.mxu0
    %v132 = vtanh.pop %v130
    %v133 = vld [vmem:[#allocation7] sm:$0xff]
    %v134 = vld [vmem:[#allocation7 + $0x8] sm:$0xff]
    %v135 = vld [vmem:[#allocation7 + $0x10] sm:$0xff]
    %v136 = vld [vmem:[#allocation7 + $0x18] sm:$0xff]
    %v137 = vld [vmem:[#allocation7 + $0x20] sm:$0xff]
    %v138 = vld [vmem:[#allocation7 + $0x28] sm:$0xff]
    %v139 = vld [vmem:[#allocation7 + $0x30] sm:$0xff]
    %v140 = vld [vmem:[#allocation7 + $0x38] sm:$0xff]
    %v141 = vld [vmem:[#allocation7 + $0x40] sm:$0xff]
    %v142 = vld [vmem:[#allocation7 + $0x48] sm:$0xff]
    %v143 = vld [vmem:[#allocation7 + $0x50] sm:$0xff]
    %v144 = vld [vmem:[#allocation7 + $0x58] sm:$0xff]
    %v145 = vld [vmem:[#allocation7 + $0x60] sm:$0xff]
    %v146 = vld [vmem:[#allocation7 + $0x68] sm:$0xff]
    %v147 = vld [vmem:[#allocation7 + $0x70] sm:$0xff]
    %v148 = vld [vmem:[#allocation7 + $0x78] sm:$0xff]
    %v149 = vld [vmem:[#allocation8] sm:$0x1]
    %v151 = vperm.slane %v149, 0
    %153 = vmatpush.msra.mxu0 %v148
    %154 = vmatpush.msra.mxu0 %v147
    %155 = vmatpush.msra.mxu0 %v146
    %156 = vmatpush.msra.mxu0 %v145
    %157 = vmatpush.msra.mxu0 %v144
    %158 = vmatpush.msra.mxu0 %v143
    %159 = vmatpush.msra.mxu0 %v142
    %160 = vmatpush.msra.mxu0 %v141
    %161 = vmatpush.msra.mxu0 %v140
    %162 = vmatpush.msra.mxu0 %v139
    %163 = vmatpush.msra.mxu0 %v138
    %164 = vmatpush.msra.mxu0 %v137
    %165 = vmatpush.msra.mxu0 %v136
    %166 = vmatpush.msra.mxu0 %v135
    %167 = vmatpush.msra.mxu0 %v134
    %168 = vmatpush.msra.mxu0 %v133
    %169 = vmatmul.f32.gmra.mxu0 %v132
    %v170 = vpop.f32.mrf.mxu0
    %v171 = vadd.f32 %v151, %v170
    %172 = vdwg.mxu0
    %v173 = vtanh.pop %v171
    %v174 = vlaneseq
    %v175 = vand.u32 %v174, 127
    %vm176 = vcmp.ge.s32.totalorder %v175, 64
    %v177 = vld [vmem:[#allocation10] sm:$0xff]
    %v178 = vld [vmem:[#allocation10 + $0x8] sm:$0xff]
    %v179 = vld [vmem:[#allocation10 + $0x10] sm:$0xff]
    %v180 = vld [vmem:[#allocation10 + $0x18] sm:$0xff]
    %v181 = vld [vmem:[#allocation10 + $0x20] sm:$0xff]
    %v182 = vld [vmem:[#allocation10 + $0x28] sm:$0xff]
    %v183 = vld [vmem:[#allocation10 + $0x30] sm:$0xff]
    %v184 = vld [vmem:[#allocation10 + $0x38] sm:$0xff]
    %v185 = vld [vmem:[#allocation10 + $0x40] sm:$0xff]
    %v186 = vld [vmem:[#allocation10 + $0x48] sm:$0xff]
    %v187 = vld [vmem:[#allocation10 + $0x50] sm:$0xff]
    %v188 = vld [vmem:[#allocation10 + $0x58] sm:$0xff]
    %v189 = vld [vmem:[#allocation10 + $0x60] sm:$0xff]
    %v190 = vld [vmem:[#allocation10 + $0x68] sm:$0xff]
    %v191 = vld [vmem:[#allocation10 + $0x70] sm:$0xff]
    %v192 = vld [vmem:[#allocation10 + $0x78] sm:$0xff]
    %v193 = vld [vmem:[#allocation10 + $0x80] sm:$0xff]
    %v194 = vld [vmem:[#allocation10 + $0x88] sm:$0xff]
    %v195 = vld [vmem:[#allocation10 + $0x90] sm:$0xff]
    %v196 = vld [vmem:[#allocation10 + $0x98] sm:$0xff]
    %v197 = vld [vmem:[#allocation10 + $0xa0] sm:$0xff]
    %v198 = vld [vmem:[#allocation10 + $0xa8] sm:$0xff]
    %v199 = vld [vmem:[#allocation10 + $0xb0] sm:$0xff]
    %v200 = vld [vmem:[#allocation10 + $0xb8] sm:$0xff]
    %v201 = vld [vmem:[#allocation10 + $0xc0] sm:$0xff]
    %v202 = vld [vmem:[#allocation10 + $0xc8] sm:$0xff]
    %v203 = vld [vmem:[#allocation10 + $0xd0] sm:$0xff]
    %v204 = vld [vmem:[#allocation10 + $0xd8] sm:$0xff]
    %v205 = vld [vmem:[#allocation10 + $0xe0] sm:$0xff]
    %v206 = vld [vmem:[#allocation10 + $0xe8] sm:$0xff]
    %v207 = vld [vmem:[#allocation10 + $0xf0] sm:$0xff]
    %v208 = vld [vmem:[#allocation10 + $0xf8] sm:$0xff]
    %v209 = vld [vmem:[%s6] sm:$0x3]
    %v211 = vperm.slane %v209, 0
    %v212 = vperm.slane %v209, 1
    %215 = vmatpush.msra.mxu0 %v207
    %216 = vmatpush.msra.mxu0 %v205
    %217 = vmatpush.msra.mxu0 %v203
    %218 = vmatpush.msra.mxu0 %v201
    %219 = vmatpush.msra.mxu0 %v199
    %220 = vmatpush.msra.mxu0 %v197
    %221 = vmatpush.msra.mxu0 %v195
    %222 = vmatpush.msra.mxu0 %v193
    %223 = vmatpush.msra.mxu0 %v191
    %224 = vmatpush.msra.mxu0 %v189
    %225 = vmatpush.msra.mxu0 %v187
    %226 = vmatpush.msra.mxu0 %v185
    %227 = vmatpush.msra.mxu0 %v183
    %228 = vmatpush.msra.mxu0 %v181
    %229 = vmatpush.msra.mxu0 %v179
    %230 = vmatpush.msra.mxu0 %v177
    %231 = vmatmul.f32.gmra.mxu0 %v173
    %v232 = vpop.f32.mrf.mxu0
    %v233 = vadd.f32 %v211, %v232
    %234 = vdwg.mxu0
    %235 = vmatpush.msra.mxu0 %v208
    %236 = vmatpush.msra.mxu0 %v206
    %237 = vmatpush.msra.mxu0 %v204
    %238 = vmatpush.msra.mxu0 %v202
    %239 = vmatpush.msra.mxu0 %v200
    %240 = vmatpush.msra.mxu0 %v198
    %241 = vmatpush.msra.mxu0 %v196
    %242 = vmatpush.msra.mxu0 %v194
    %243 = vmatpush.msra.mxu0 %v192
    %244 = vmatpush.msra.mxu0 %v190
    %245 = vmatpush.msra.mxu0 %v188
    %246 = vmatpush.msra.mxu0 %v186
    %247 = vmatpush.msra.mxu0 %v184
    %248 = vmatpush.msra.mxu0 %v182
    %249 = vmatpush.msra.mxu0 %v180
    %250 = vmatpush.msra.mxu0 %v178
    %251 = vmatmul.f32.gmra.mxu0 %v173
    %v252 = vpop.f32.mrf.mxu0
    %v253 = vadd.f32 %v212, %v252
    %254 = vdwg.mxu0
    %255 = vmax.xlane.f32.xlu0 %v233
    %v256 = vpop.xlane.xlu0 %255
    %v257 = vsub.f32 %v233, %v256
    %v258 = vmul.f32 %v257, 1.442695
    %v259 = vpow.pop %v258
    %v260 = vsel %vm176, 0.0, %v259
    %261 = vadd.xlane.f32.xlu0 %v260
    %v262 = vpop.xlane.xlu0 %261
    %v263 = vsel %vm176, %v259, 0.0
    %264 = vadd.xlane.f32.xlu0 %v263
    %v265 = vpop.xlane.xlu0 %264
    %v266 = vsel %vm176, %v265, %v262
    %v267 = vrcp.pop %v266
    %v268 = vmul.f32 %v266, %v267
    %v269 = vsub.f32 1.0, %v268
    %v270 = vmul.f32 %v267, %v269
    %v271 = vadd.f32 %v267, %v270
    %vm272 = vweird.f32 %v266
    %vm273 = vweird.f32 %v267
    %vm274 = vmor %vm272, %vm273
    %v275 = vsel %vm274, %v267, %v271
    %v276 = vand.u32 2147483647, %v266
    %vm277 = vcmp.eq.f32.partialorder %v276, 8.507059e+37
    %v278 = vand.u32 %v266, 2147483648
    %v279 = vor.u32 1.1754944e-38, %v278
    %v280 = vsel %vm277, %v279, %v275
    %v281 = vmul.f32 %v259, %v280
    %282 = vst [vmem:[#allocation11] sm:$0xff] %v281
    %283 = vmax.xlane.f32.xlu0 %v253
    %v284 = vpop.xlane.xlu0 %283
    %v285 = vsub.f32 %v253, %v284
    %v286 = vmul.f32 %v285, 1.442695
    %v287 = vpow.pop %v286
    %v288 = vsel %vm176, 0.0, %v287
    %289 = vadd.xlane.f32.xlu0 %v288
    %v290 = vpop.xlane.xlu0 %289
    %v291 = vsel %vm176, %v287, 0.0
    %292 = vadd.xlane.f32.xlu0 %v291
    %v293 = vpop.xlane.xlu0 %292
    %v294 = vsel %vm176, %v293, %v290
    %v295 = vrcp.pop %v294
    %v296 = vmul.f32 %v294, %v295
    %v297 = vsub.f32 1.0, %v296
    %v298 = vmul.f32 %v295, %v297
    %v299 = vadd.f32 %v295, %v298
    %vm300 = vweird.f32 %v294
    %vm301 = vweird.f32 %v295
    %vm302 = vmor %vm300, %vm301
    %v303 = vsel %vm302, %v295, %v299
    %v304 = vand.u32 2147483647, %v294
    %vm305 = vcmp.eq.f32.partialorder %v304, 8.507059e+37
    %v306 = vand.u32 %v294, 2147483648
    %v307 = vor.u32 1.1754944e-38, %v306
    %v308 = vsel %vm305, %v307, %v303
    %v309 = vmul.f32 %v287, %v308
    %310 = vst [vmem:[#allocation11 + $0x8] sm:$0xff] %v309
    // Predicated region
    $region50: #{tpu_custom_call.1} parent=1 // pred_check
      _
    $region51: #{tpu_custom_call.1} parent=1 // pred_check_branch
      %312 = sbr.rel (0) target = $region53
    $region52: #{tpu_custom_call.1} parent=1 // pred_region
      %314 = vsyncadd [#allocation4], 0
      %s316 = sshll.u32 [#allocation11], 4
      %s317 = int_to_ptr.vmem [resolvable:$true] %s316
      %s318 = sshll.u32 %s7, 4
      %s319 = int_to_ptr.hbm [resolvable:$true] %s318
      %321 = dma.vmem_to_hbm [thread:$0]  %s317, 256, %s319, [#allocation4]
    $region53: #{tpu_custom_call.1} parent=1 // pred_fallthru
      _
    // Predicated region
    $region54: #{tpu_custom_call.1} parent=1 // pred_check
      _
    $region55: #{tpu_custom_call.1} parent=1 // pred_check_branch
      %323 = sbr.rel (0) target = $region57
    $region56: #{tpu_custom_call.1} parent=1 // pred_region
      %325 = dma.done [#allocation4], 256
    $region57: #{tpu_custom_call.1} parent=1 // pred_fallthru
      _
    %326 = vsyncpa [#allocation3], 1
    %327 = vsyncpa [#allocation6], 1
    %328 = vsyncpa [#allocation9], 1
    %329 = vsyncpa [#allocation4], 1

</llo_original>
